<compile_context>
chip_gen: v7x
topology: tpu7x:2x2x1
jax: 0.10.0
libtpu: 0.0.40
codegen_flags: <defaults>
</compile_context>

<pallas_src>
import functools

import jax
import jax.numpy as jnp
from jax.experimental import pallas as pl
from jax.experimental.pallas import tpu as pltpu


def _round_up(x, m):
    return ((x + m - 1) // m) * m


# ---------------------------------------------------------------------------
# Kernel 1: ratings tile  O[i, j] = U[i] @ I[j]^T
#   bf16 MXU matmul, f32 accumulation, bf16 (configurable) output store.
#   Item tile cast to bf16 in-kernel (no-op if the table is bf16 at rest).
# ---------------------------------------------------------------------------
def _ratings_kernel(u_ref, it_ref, o_ref):
    # u_ref:  (TM, D) bf16 user-embedding tile (resident over the item axis)
    # it_ref: (TN, D) item-embedding tile, streamed, cast in-kernel
    # o_ref:  (TM, TN) lane-dense output tile
    acc = jax.lax.dot_general(
        u_ref[...],
        it_ref[...].astype(jnp.bfloat16),
        dimension_numbers=(((1,), (1,)), ((), ())),   # contract feature dims (NT)
        preferred_element_type=jnp.float32)
    o_ref[...] = acc.astype(o_ref.dtype)


def get_user_ratings(user_idx, user_emb, item_emb, *,
                     tm_max=512, tn_max=2048, out_dtype=jnp.bfloat16,
                     vmem_budget=12 * 1024 * 1024):
    """user_idx: (BU,) int32; user_emb: (NU, D); item_emb: (NI, D) -> (BU, NI)."""
    bu = user_idx.shape[0]
    ni, d = item_emb.shape
    item_bytes = item_emb.dtype.itemsize
    out_bytes = jnp.dtype(out_dtype).itemsize

    # Tile selection: tm multiple of 16 (bf16 sublane packing), tn multiple of 128.
    tm = min(tm_max, _round_up(bu, 16))
    tn = min(tn_max, _round_up(ni, 128))

    def tile_bytes(tm_, tn_):  # double-buffered per-step working set
        return 2 * (tm_ * d * 2 + tn_ * d * item_bytes + tm_ * tn_ * out_bytes)

    while tile_bytes(tm, tn) > vmem_budget and tn > 128:
        tn = max(128, _round_up(tn // 2, 128))
    while tile_bytes(tm, tn) > vmem_budget and tm > 16:
        tm = max(16, _round_up(tm // 2, 16))

    bu_p = _round_up(bu, tm)
    # v7x megacore: keep >= 2 grid blocks when the user axis has a single block.
    if bu_p // tm == 1 and ni > 128 and pl.cdiv(ni, tn) < 2:
        tn = max(128, _round_up(-(-ni // 2), 128))
    grid = (bu_p // tm, pl.cdiv(ni, tn))  # item axis innermost

    # glue: tiny O(BU*D) user-row gather + bf16 cast; item table stays put.
    idx_p = jnp.pad(user_idx, (0, bu_p - bu)) if bu_p != bu else user_idx
    u_sel = jnp.take(user_emb, idx_p, axis=0).astype(jnp.bfloat16)

    flops = 2 * bu_p * grid[1] * tn * d
    bytes_accessed = (u_sel.size * 2                       # user tiles (resident over j)
                      + ni * d * item_bytes * grid[0]      # item table once per user tile
                      + bu_p * ni * out_bytes)             # output stream

    out = pl.pallas_call(
        _ratings_kernel,
        out_shape=jax.ShapeDtypeStruct((bu_p, ni), out_dtype),
        grid_spec=pltpu.PrefetchScalarGridSpec(
            num_scalar_prefetch=0,
            grid=grid,
            in_specs=[
                pl.BlockSpec((tm, d), lambda i, j: (i, 0)),   # user tile
                pl.BlockSpec((tn, d), lambda i, j: (j, 0)),   # item tile (streamed)
            ],
            out_specs=pl.BlockSpec((tm, tn), lambda i, j: (i, j)),
        ),
        compiler_params=pltpu.CompilerParams(
            dimension_semantics=("parallel", "parallel")),
        cost_estimate=pl.CostEstimate(
            flops=flops, transcendentals=0, bytes_accessed=bytes_accessed),
    )(u_sel, item_emb)
    return out[:bu]


# ---------------------------------------------------------------------------
# Kernel 2: BPR loss = mean(softplus(-(<u,p> - <u,n>)))
#   Batch-tiled with a resident (1,1) accumulator (init/finalize via pl.when).
#   bf16 inputs upcast in-kernel; rows beyond the true batch are masked via an
#   in-kernel iota test (robust against partial / undefined boundary blocks).
# ---------------------------------------------------------------------------
def _bpr_loss_kernel(u_ref, p_ref, n_ref, o_ref, *, total_b, tb):
    i = pl.program_id(0)

    @pl.when(i == 0)
    def _():
        o_ref[...] = jnp.zeros_like(o_ref)

    u = u_ref[...].astype(jnp.float32)                        # (TB, D)
    p = p_ref[...].astype(jnp.float32)
    n = n_ref[...].astype(jnp.float32)
    pos = jnp.sum(u * p, axis=-1, keepdims=True)              # (TB, 1)
    neg = jnp.sum(u * n, axis=-1, keepdims=True)              # (TB, 1)
    # softplus(-x) = log(1 + exp(-x)), numerically-stable form
    loss = jnp.logaddexp(0.0, -(pos - neg))                   # (TB, 1)
    row = i * tb + jax.lax.broadcasted_iota(jnp.int32, loss.shape, 0)
    loss = jnp.where(row < total_b, loss, 0.0)                # mask invalid rows
    o_ref[...] += jnp.sum(loss, keepdims=True)                # (1, 1) accumulate

    @pl.when(i == pl.num_programs(0) - 1)
    def _():
        o_ref[...] = o_ref[...] / total_b


def calculate_loss(user_idx, pos_idx, neg_idx, user_emb, item_emb, *, tb_max=1024):
    # glue: O(B*D) row gathers; bf16 halves the 3*B*D HBM read, math is f32.
    u = jnp.take(user_emb, user_idx, axis=0).astype(jnp.bfloat16)
    p = jnp.take(item_emb, pos_idx, axis=0).astype(jnp.bfloat16)
    n = jnp.take(item_emb, neg_idx, axis=0).astype(jnp.bfloat16)
    b, d = u.shape

    tb = min(tb_max, _round_up(b, 16))
    grid = (pl.cdiv(b, tb),)

    out = pl.pallas_call(
        functools.partial(_bpr_loss_kernel, total_b=b, tb=tb),
        out_shape=jax.ShapeDtypeStruct((1, 1), jnp.float32),
        grid_spec=pltpu.PrefetchScalarGridSpec(
            num_scalar_prefetch=0,
            grid=grid,
            in_specs=[
                pl.BlockSpec((tb, d), lambda i: (i, 0)),
                pl.BlockSpec((tb, d), lambda i: (i, 0)),
                pl.BlockSpec((tb, d), lambda i: (i, 0)),
            ],
            out_specs=pl.BlockSpec((1, 1), lambda i: (0, 0)),   # resident accumulator
        ),
        compiler_params=pltpu.CompilerParams(
            dimension_semantics=("arbitrary",)),
    )(u, p, n)
    return out[0, 0]


# ---------------------------------------------------------------------------
# Driver
# ---------------------------------------------------------------------------
if __name__ == "__main__":
    key = jax.random.PRNGKey(0)
    k_u, k_i, k_uidx, k_pidx, k_nidx = jax.random.split(key, 5)

    NUM_USERS, NUM_ITEMS, DIM = 128, 2048, 128
    BATCH = 64

    user_emb = jax.random.normal(k_u, (NUM_USERS, DIM), jnp.float32) * 0.02
    item_emb = jax.random.normal(k_i, (NUM_ITEMS, DIM), jnp.float32) * 0.02

    user_idx = jax.random.randint(k_uidx, (BATCH,), 0, NUM_USERS, jnp.int32)
    pos_idx = jax.random.randint(k_pidx, (BATCH,), 0, NUM_ITEMS, jnp.int32)
    neg_idx = jax.random.randint(k_nidx, (BATCH,), 0, NUM_ITEMS, jnp.int32)

    ratings = jax.block_until_ready(
        get_user_ratings(user_idx, user_emb, item_emb))
    loss = jax.block_until_ready(
        calculate_loss(user_idx, pos_idx, neg_idx, user_emb, item_emb))

    # Reference checks (plain JAX) using the same bf16 input rounding.
    u_bf = jnp.take(user_emb, user_idx, 0).astype(jnp.bfloat16).astype(jnp.float32)
    i_bf = item_emb.astype(jnp.bfloat16).astype(jnp.float32)
    ref_ratings = (u_bf @ i_bf.T).astype(jnp.bfloat16).astype(jnp.float32)

    p_bf = jnp.take(item_emb, pos_idx, 0).astype(jnp.bfloat16).astype(jnp.float32)
    n_bf = jnp.take(item_emb, neg_idx, 0).astype(jnp.bfloat16).astype(jnp.float32)
    ref_loss = jnp.mean(jnp.logaddexp(
        0.0, -(jnp.sum(u_bf * p_bf, -1) - jnp.sum(u_bf * n_bf, -1))))

    ratings_f32 = ratings.astype(jnp.float32)
    assert ratings.shape == (BATCH, NUM_ITEMS)
    assert jnp.allclose(ratings_f32, ref_ratings, atol=2e-3), float(
        jnp.max(jnp.abs(ratings_f32 - ref_ratings)))
    assert jnp.allclose(loss, ref_loss, atol=1e-5), (float(loss), float(ref_loss))

    print("KERNEL_OK")
</pallas_src>

<mosaic_0001>
module attributes {stable_mosaic.version = 11 : i64} {
  func.func @_ratings_kernel(%arg0: i32, %arg1: i32, %arg2: memref<64x128xbf16, #tpu.memory_space<vmem>>, %arg3: memref<1024x128xf32, #tpu.memory_space<vmem>>, %arg4: memref<64x1024xbf16, #tpu.memory_space<vmem>>) attributes {dimension_semantics = [#tpu.dimension_semantics<parallel>, #tpu.dimension_semantics<parallel>], iteration_bounds = array<i64: 1, 2>, scalar_prefetch = 0 : i64, scratch_operands = 0 : i64, tpu.core_type = #tpu.core_type<tc>, window_params = [{transform_indices = @transform_0, window_bounds = array<i64: 64, 128>}, {transform_indices = @transform_1, window_bounds = array<i64: 1024, 128>}, {transform_indices = @transform_2, window_bounds = array<i64: 64, 1024>}]} {
    %c0 = arith.constant 0 : index
    %c0_0 = arith.constant 0 : index
    %0 = vector.load %arg2[%c0, %c0_0] : memref<64x128xbf16, #tpu.memory_space<vmem>>, vector<64x128xbf16>
    %c0_1 = arith.constant 0 : index
    %c0_2 = arith.constant 0 : index
    %1 = vector.load %arg3[%c0_1, %c0_2] : memref<1024x128xf32, #tpu.memory_space<vmem>>, vector<1024x128xf32>
    %2 = arith.truncf %1 : vector<1024x128xf32> to vector<1024x128xbf16>
    %cst = arith.constant dense<0.000000e+00> : vector<64x1024xf32>
    %3 = tpu.matmul %0, %2, %cst {dimension_numbers = #tpu.dot_dimension_numbers<[1], [1], [0], [0], [0, 0, 1, 0], [], []>} : vector<64x128xbf16>, vector<1024x128xbf16>, vector<64x1024xf32> -> vector<64x1024xf32>
    %4 = arith.truncf %3 : vector<64x1024xf32> to vector<64x1024xbf16>
    %c0_3 = arith.constant 0 : index
    %c0_4 = arith.constant 0 : index
    %5 = vector.load %arg4[%c0_3, %c0_4] : memref<64x1024xbf16, #tpu.memory_space<vmem>>, vector<64x1024xbf16>
    tpu.vector_store %arg4[%c0_3, %c0_4], %4 {strides = array<i32>} : memref<64x1024xbf16, #tpu.memory_space<vmem>>, vector<64x1024xbf16>,
    return
  }
  func.func @transform_0(%arg0: i32, %arg1: i32) -> (i32, i32) {
    %c0_i32 = arith.constant 0 : i32
    %c0_i32_0 = arith.constant 0 : i32
    return %arg0, %c0_i32 : i32, i32
  }
  func.func @transform_1(%arg0: i32, %arg1: i32) -> (i32, i32) {
    %c0_i32 = arith.constant 0 : i32
    %c0_i32_0 = arith.constant 0 : i32
    return %arg1, %c0_i32 : i32, i32
  }
  func.func @transform_2(%arg0: i32, %arg1: i32) -> (i32, i32) {
    %c0_i32 = arith.constant 0 : i32
    return %arg0, %arg1 : i32, i32
  }
}

</mosaic_0001>

<llo_original>
// kernel: tpu_custom_call.1
$region0: #{tpu_custom_call.1}
  #allocation0 [shape = 'u32[]', space=smem, size = 0x4, offset = 0x4, fixed_abs, tag = 'smem constant byte address 0x4 - core index']
  #allocation1 [shape = 'u32[144,128]{1,0:T(1,128)}', space=vmem, size = 0x12000, scoped, tag = 'internal scratch']
  %s0 = inlined_call_operand.hbm [shape: bf16[64,128], index: 0, kind: input, shape index: {}]
  %s1 = inlined_call_operand.hbm [shape: f32[2048,128], index: 1, kind: input, shape index: {}]
  %s2 = inlined_call_operand.hbm [shape: bf16[64,2048], index: 2, kind: output, shape index: {}]
  %s3 = sld [smem:[#allocation0]]
  $region49: #{tpu_custom_call.1} parent=0
    _
  %s5 = ssub.s32 1, %s3
  %s6 = scalar_select 0, %s5, %s3
  $region1: #{tpu_custom_call.1} parent=0
    #allocation2 [shape = 'u8[16384]{0}', space=vmem, size = 0x4000, scoped, tag = 'input window, operand 0, single buffered']
    #allocation3 [shape = 's32[2]{0}', space=sflag, size = 0x8, scoped, tag = 'scoped memory for tpu_custom_call.1']
    #allocation4 [shape = 's32[2]{0}', space=sflag, size = 0x8, scoped, tag = 'scoped memory for tpu_custom_call.1']
    #allocation5 [shape = 'u8[1048576]{0}', space=vmem, size = 0x100000, scoped, tag = 'input window, operand 1']
    #allocation6 [shape = 's32[2]{0}', space=sflag, size = 0x8, scoped, tag = 'scoped memory for tpu_custom_call.1']
    #allocation7 [shape = 'u8[262144]{0}', space=vmem, size = 0x40000, scoped, tag = 'output window, operand 0']
    %7 = vsyncpa [#allocation3], 0
    %8 = vsyncpa [#allocation6], 0
    %s9 = scalar_lea.sflag [#allocation6], 1
    %10 = vsyncpa %s9, 0
    %11 = vsyncpa [#allocation4], 0
    %s12 = scalar_lea.sflag [#allocation4], 1
    %13 = vsyncpa %s12, 0
    loop: start=0, step=1, limit=4
    $region2: #{tpu_custom_call.1} parent=1 // loop_pre_header
      _
    $region3: #{tpu_custom_call.1} parent=1 // loop_header
      %s15 = sphi 0, %s19
      %p16 = scmp.ge.s32.totalorder %s15, 4
      %s22 = sphi 0, %s34
      %s23 = sphi 0, %s30
      %s24 = sphi 0, %s22
      %s25 = sphi 0, %s23
      %s26 = sphi 0, %s24
      %s27 = sphi 0, %s25
      %s37 = sphi 0, %s39
      %s40 = sphi 0, %s37
      %s41 = sphi 0, %s40
      %s57 = sphi 0, %s41
      %s63 = sphi 0, %s65
      %s66 = sphi 0, %s63
      %s67 = sphi 0, %s66
      %s83 = sphi 0, %s67
      %s91 = sphi 0, %s93
      %s94 = sphi 0, %s91
      %s95 = sphi 0, %s94
      %s111 = sphi 0, %s95
    $region4: #{tpu_custom_call.1} parent=1 // loop_header_branch
      %18 = sbr.rel (%p16) target = $region8
    $region5: #{tpu_custom_call.1} parent=1 // loop_body
      %s20 = ssub.s32 %s15, 1
      %s21 = ssub.s32 %s15, 2
      %s28 = sadd.s32 1, %s23
      %p29 = scmp.ge.s32.totalorder %s28, 2
      %s30 = scalar_select %p29, 0, %s28
      %s31 = sadd.s32 1, %s22
      %s32 = scalar_select %p29, %s31, %s22
      %p33 = scmp.ge.s32.totalorder %s32, 1
      %s34 = scalar_select %p33, 0, %s32
      %s35 = ssub.s32 %s22, %s34
      %p36 = scmp.eq.s32.totalorder %s35, 0
      %s38 = sadd.s32 %s37, 1
      %s39 = scalar_select %p36, %s37, %s38
      %p42 = pneg %p36
      %p43 = scmp.eq.s32.totalorder %s15, 1
      %p44 = por %p42, %p43
      %p45 = scmp.ne.s32.totalorder %s37, %s40
      %p46 = scmp.eq.s32.totalorder %s15, 0
      %p47 = por %p45, %p46
      %p48 = scmp.ne.s32.totalorder %s37, %s40
      %p49 = scmp.eq.s32.totalorder %s20, 1
      %p50 = por %p48, %p49
      %p51 = scmp.ne.s32.totalorder %s40, %s41
      %p52 = scmp.eq.s32.totalorder %s20, 0
      %p53 = por %p51, %p52
      %p54 = scmp.ne.s32.totalorder %s40, %s41
      %p55 = scmp.eq.s32.totalorder %s21, 1
      %p56 = por %p54, %p55
      %p58 = scmp.ne.s32.totalorder %s41, %s57
      %p59 = scmp.eq.s32.totalorder %s21, 0
      %p60 = por %p58, %p59
      %s61 = ssub.s32 %s23, %s30
      %p62 = scmp.eq.s32.totalorder %s61, 0
      %s64 = sadd.s32 %s63, 1
      %s65 = scalar_select %p62, %s63, %s64
      %p68 = pneg %p62
      %p69 = scmp.eq.s32.totalorder %s15, 1
      %p70 = por %p68, %p69
      %p71 = scmp.ne.s32.totalorder %s63, %s66
      %p72 = scmp.eq.s32.totalorder %s15, 0
      %p73 = por %p71, %p72
      %p74 = scmp.ne.s32.totalorder %s63, %s66
      %p75 = scmp.eq.s32.totalorder %s20, 1
      %p76 = por %p74, %p75
      %p77 = scmp.ne.s32.totalorder %s66, %s67
      %p78 = scmp.eq.s32.totalorder %s20, 0
      %p79 = por %p77, %p78
      %p80 = scmp.ne.s32.totalorder %s66, %s67
      %p81 = scmp.eq.s32.totalorder %s21, 1
      %p82 = por %p80, %p81
      %p84 = scmp.ne.s32.totalorder %s67, %s83
      %p85 = scmp.eq.s32.totalorder %s21, 0
      %p86 = por %p84, %p85
      %s87 = ssub.s32 %s22, %s34
      %s88 = ssub.s32 %s23, %s30
      %s89 = sor.u32 %s87, %s88
      %p90 = scmp.eq.s32.totalorder %s89, 0
      %s92 = sadd.s32 %s91, 1
      %s93 = scalar_select %p90, %s91, %s92
      %p96 = pneg %p90
      %p97 = scmp.eq.s32.totalorder %s15, 1
      %p98 = por %p96, %p97
      %p99 = scmp.ne.s32.totalorder %s91, %s94
      %p100 = scmp.eq.s32.totalorder %s15, 0
      %p101 = por %p99, %p100
      %p102 = scmp.ne.s32.totalorder %s91, %s94
      %p103 = scmp.eq.s32.totalorder %s20, 1
      %p104 = por %p102, %p103
      %p105 = scmp.ne.s32.totalorder %s94, %s95
      %p106 = scmp.eq.s32.totalorder %s20, 0
      %p107 = por %p105, %p106
      %p108 = scmp.ne.s32.totalorder %s94, %s95
      %p109 = scmp.eq.s32.totalorder %s21, 1
      %p110 = por %p108, %p109
      %p112 = scmp.ne.s32.totalorder %s95, %s111
      %p113 = scmp.eq.s32.totalorder %s21, 0
      %p114 = por %p112, %p113
      %p115 = scmp.le.s32.totalorder 1, %s15
      %p116 = scmp.lt.s32.totalorder %s15, 3
      %p117 = pnand %p115, %p116
      %p118 = pneg %p117
      // Predicated region
      $region9: #{tpu_custom_call.1} parent=5 // pred_check
        _
      $region10: #{tpu_custom_call.1} parent=5 // pred_check_branch
        %120 = sbr.rel (%p117) target = $region12
      $region11: #{tpu_custom_call.1} parent=5 // pred_region
        %s121 = ssub.s32 %s15, 1
        // Predicated region
        $region13: #{tpu_custom_call.1} parent=11 // pred_check
          %p122 = pneg %p53
        $region14: #{tpu_custom_call.1} parent=11 // pred_check_branch
          %124 = sbr.rel (%p122) target = $region16
        $region15: #{tpu_custom_call.1} parent=11 // pred_region
          %s125 = smul.u32 8, %s24
          %s127 = ssub.s32 512, 512
          %128 = vsyncadd [#allocation3], %s127
          %s129 = smul.addr %s125, 64
          %s130 = scalar_lea.hbm %s0, %s129
          %s131 = sshll.u32 [#allocation2], 4
          %s132 = int_to_ptr.vmem [resolvable:$true] %s131
          %137 = dma.hbm_to_vmem [thread:$0]  %s130, 512, %s132, [#allocation3], 64, 64, 4
        $region16: #{tpu_custom_call.1} parent=11 // pred_fallthru
          _
      $region12: #{tpu_custom_call.1} parent=5 // pred_fallthru
        _
      %p138 = scmp.lt.s32.totalorder %s15, 2
      // Predicated region
      $region17: #{tpu_custom_call.1} parent=5 // pred_check
        %p139 = pneg %p138
      $region18: #{tpu_custom_call.1} parent=5 // pred_check_branch
        %141 = sbr.rel (%p139) target = $region20
      $region19: #{tpu_custom_call.1} parent=5 // pred_region
        // Predicated region
        $region21: #{tpu_custom_call.1} parent=19 // pred_check
          %p142 = pneg %p73
        $region22: #{tpu_custom_call.1} parent=19 // pred_check_branch
          %144 = sbr.rel (%p142) target = $region24
        $region23: #{tpu_custom_call.1} parent=19 // pred_region
          %s145 = sand.u32 %s63, 1
          %s146 = scalar_lea.sflag [#allocation6], %s145
          %s147 = sand.u32 %s63, 1
          %s148 = smul.addr %s147, 1024
          %s149 = scalar_lea.vmem [#allocation5], %s148
          %s150 = smul.u32 128, %s23
          %s152 = ssub.s32 16384, 16384
          %153 = vsyncadd %s146, %s152
          %s154 = smul.addr %s150, 128
          %s155 = scalar_lea.hbm %s1, %s154
          %s156 = sshll.u32 %s149, 4
          %s157 = int_to_ptr.vmem [resolvable:$true] %s156
          %162 = dma.hbm_to_vmem [thread:$0]  %s155, 16384, %s157, %s146, 128, 128, 8
        $region24: #{tpu_custom_call.1} parent=19 // pred_fallthru
          _
      $region20: #{tpu_custom_call.1} parent=5 // pred_fallthru
        _
      %p163 = scmp.le.s32.totalorder 1, %s15
      %p164 = scmp.lt.s32.totalorder %s15, 3
      %p165 = pnand %p163, %p164
      %p166 = pneg %p165
      // Predicated region
      $region25: #{tpu_custom_call.1} parent=5 // pred_check
        _
      $region26: #{tpu_custom_call.1} parent=5 // pred_check_branch
        %168 = sbr.rel (%p165) target = $region28
      $region27: #{tpu_custom_call.1} parent=5 // pred_region
        %s169 = ssub.s32 %s15, 1
        // Predicated region
        $region29: #{tpu_custom_call.1} parent=27 // pred_check
          %p170 = pneg %p53
        $region30: #{tpu_custom_call.1} parent=27 // pred_check_branch
          %172 = sbr.rel (%p170) target = $region32
        $region31: #{tpu_custom_call.1} parent=27 // pred_region
          %173 = dma.done [#allocation3], 512
        $region32: #{tpu_custom_call.1} parent=27 // pred_fallthru
          _
        %s174 = sand.u32 %s66, 1
        %s175 = scalar_lea.sflag [#allocation6], %s174
        %s176 = sand.u32 %s66, 1
        %s177 = smul.addr %s176, 1024
        %s178 = scalar_lea.vmem [#allocation5], %s177
        // Predicated region
        $region33: #{tpu_custom_call.1} parent=27 // pred_check
          %p179 = pneg %p79
        $region34: #{tpu_custom_call.1} parent=27 // pred_check_branch
          %181 = sbr.rel (%p179) target = $region36
        $region35: #{tpu_custom_call.1} parent=27 // pred_region
          %182 = dma.done %s175, 16384
        $region36: #{tpu_custom_call.1} parent=27 // pred_fallthru
          _
        %p183 = pneg %p53
        %p184 = pneg %p50
        %s185 = sand.u32 %s66, 1
        %s186 = scalar_lea.sflag [#allocation6], %s185
        %s187 = sand.u32 %s66, 1
        %s188 = smul.addr %s187, 1024
        %s189 = scalar_lea.vmem [#allocation5], %s188
        %p190 = pneg %p79
        %p191 = pneg %p76
        %p192 = pneg %p107
        %p193 = pneg %p104
        %s194 = sand.u32 %s94, 1
        %s195 = scalar_lea.sflag [#allocation4], %s194
        %s196 = sand.u32 %s94, 1
        %s197 = smul.addr %s196, 256
        %s198 = scalar_lea.vmem [#allocation7], %s197
        %s199 = smul.u32 8, %s24
        %s200 = smul.u32 128, %s25
        %s201 = smul.u32 8, %s24
        %s202 = smul.u32 8, %s25
        %v204 = vld [vmem:[#allocation2] sm:$0xf]
        %v205 = vld [vmem:[#allocation2 + $0x4] sm:$0xf]
        %v206 = vld [vmem:[#allocation2 + $0x8] sm:$0xf]
        %v207 = vld [vmem:[#allocation2 + $0xc] sm:$0xf]
        %v208 = vld [vmem:[#allocation2 + $0x10] sm:$0xf]
        %v209 = vld [vmem:[#allocation2 + $0x14] sm:$0xf]
        %v210 = vld [vmem:[#allocation2 + $0x18] sm:$0xf]
        %v211 = vld [vmem:[#allocation2 + $0x1c] sm:$0xf]
        %v212 = vld [vmem:[%s178] sm:$0xff]
        %v213 = vld [vmem:[%s178 + $0x8] sm:$0xff]
        %v214 = vld [vmem:[%s178 + $0x10] sm:$0xff]
        %v215 = vld [vmem:[%s178 + $0x18] sm:$0xff]
        %v216 = vld [vmem:[%s178 + $0x20] sm:$0xff]
        %v217 = vld [vmem:[%s178 + $0x28] sm:$0xff]
        %v218 = vld [vmem:[%s178 + $0x30] sm:$0xff]
        %v219 = vld [vmem:[%s178 + $0x38] sm:$0xff]
        %v220 = vld [vmem:[%s178 + $0x40] sm:$0xff]
        %v221 = vld [vmem:[%s178 + $0x48] sm:$0xff]
        %v222 = vld [vmem:[%s178 + $0x50] sm:$0xff]
        %v223 = vld [vmem:[%s178 + $0x58] sm:$0xff]
        %v224 = vld [vmem:[%s178 + $0x60] sm:$0xff]
        %v225 = vld [vmem:[%s178 + $0x68] sm:$0xff]
        %v226 = vld [vmem:[%s178 + $0x70] sm:$0xff]
        %v227 = vld [vmem:[%s178 + $0x78] sm:$0xff]
        %v228 = vld [vmem:[%s178 + $0x80] sm:$0xff]
        %v229 = vld [vmem:[%s178 + $0x88] sm:$0xff]
        %v230 = vld [vmem:[%s178 + $0x90] sm:$0xff]
        %v231 = vld [vmem:[%s178 + $0x98] sm:$0xff]
        %v232 = vld [vmem:[%s178 + $0xa0] sm:$0xff]
        %v233 = vld [vmem:[%s178 + $0xa8] sm:$0xff]
        %v234 = vld [vmem:[%s178 + $0xb0] sm:$0xff]
        %v235 = vld [vmem:[%s178 + $0xb8] sm:$0xff]
        %v236 = vld [vmem:[%s178 + $0xc0] sm:$0xff]
        %v237 = vld [vmem:[%s178 + $0xc8] sm:$0xff]
        %v238 = vld [vmem:[%s178 + $0xd0] sm:$0xff]
        %v239 = vld [vmem:[%s178 + $0xd8] sm:$0xff]
        %v240 = vld [vmem:[%s178 + $0xe0] sm:$0xff]
        %v241 = vld [vmem:[%s178 + $0xe8] sm:$0xff]
        %v242 = vld [vmem:[%s178 + $0xf0] sm:$0xff]
        %v243 = vld [vmem:[%s178 + $0xf8] sm:$0xff]
        %v244 = vld [vmem:[%s178 + $0x100] sm:$0xff]
        %v245 = vld [vmem:[%s178 + $0x108] sm:$0xff]
        %v246 = vld [vmem:[%s178 + $0x110] sm:$0xff]
        %v247 = vld [vmem:[%s178 + $0x118] sm:$0xff]
        %v248 = vld [vmem:[%s178 + $0x120] sm:$0xff]
        %v249 = vld [vmem:[%s178 + $0x128] sm:$0xff]
        %v250 = vld [vmem:[%s178 + $0x130] sm:$0xff]
        %v251 = vld [vmem:[%s178 + $0x138] sm:$0xff]
        %v252 = vld [vmem:[%s178 + $0x140] sm:$0xff]
        %v253 = vld [vmem:[%s178 + $0x148] sm:$0xff]
        %v254 = vld [vmem:[%s178 + $0x150] sm:$0xff]
        %v255 = vld [vmem:[%s178 + $0x158] sm:$0xff]
        %v256 = vld [vmem:[%s178 + $0x160] sm:$0xff]
        %v257 = vld [vmem:[%s178 + $0x168] sm:$0xff]
        %v258 = vld [vmem:[%s178 + $0x170] sm:$0xff]
        %v259 = vld [vmem:[%s178 + $0x178] sm:$0xff]
        %v260 = vld [vmem:[%s178 + $0x180] sm:$0xff]
        %v261 = vld [vmem:[%s178 + $0x188] sm:$0xff]
        %v262 = vld [vmem:[%s178 + $0x190] sm:$0xff]
        %v263 = vld [vmem:[%s178 + $0x198] sm:$0xff]
        %v264 = vld [vmem:[%s178 + $0x1a0] sm:$0xff]
        %v265 = vld [vmem:[%s178 + $0x1a8] sm:$0xff]
        %v266 = vld [vmem:[%s178 + $0x1b0] sm:$0xff]
        %v267 = vld [vmem:[%s178 + $0x1b8] sm:$0xff]
        %v268 = vld [vmem:[%s178 + $0x1c0] sm:$0xff]
        %v269 = vld [vmem:[%s178 + $0x1c8] sm:$0xff]
        %v270 = vld [vmem:[%s178 + $0x1d0] sm:$0xff]
        %v271 = vld [vmem:[%s178 + $0x1d8] sm:$0xff]
        %v272 = vld [vmem:[%s178 + $0x1e0] sm:$0xff]
        %v273 = vld [vmem:[%s178 + $0x1e8] sm:$0xff]
        %v274 = vld [vmem:[%s178 + $0x1f0] sm:$0xff]
        %v275 = vld [vmem:[%s178 + $0x1f8] sm:$0xff]
        %v276 = vld [vmem:[%s178 + $0x200] sm:$0xff]
        %v277 = vld [vmem:[%s178 + $0x208] sm:$0xff]
        %v278 = vld [vmem:[%s178 + $0x210] sm:$0xff]
        %v279 = vld [vmem:[%s178 + $0x218] sm:$0xff]
        %v280 = vld [vmem:[%s178 + $0x220] sm:$0xff]
        %v281 = vld [vmem:[%s178 + $0x228] sm:$0xff]
        %v282 = vld [vmem:[%s178 + $0x230] sm:$0xff]
        %v283 = vld [vmem:[%s178 + $0x238] sm:$0xff]
        %v284 = vld [vmem:[%s178 + $0x240] sm:$0xff]
        %v285 = vld [vmem:[%s178 + $0x248] sm:$0xff]
        %v286 = vld [vmem:[%s178 + $0x250] sm:$0xff]
        %v287 = vld [vmem:[%s178 + $0x258] sm:$0xff]
        %v288 = vld [vmem:[%s178 + $0x260] sm:$0xff]
        %v289 = vld [vmem:[%s178 + $0x268] sm:$0xff]
        %v290 = vld [vmem:[%s178 + $0x270] sm:$0xff]
        %v291 = vld [vmem:[%s178 + $0x278] sm:$0xff]
        %v292 = vld [vmem:[%s178 + $0x280] sm:$0xff]
        %v293 = vld [vmem:[%s178 + $0x288] sm:$0xff]
        %v294 = vld [vmem:[%s178 + $0x290] sm:$0xff]
        %v295 = vld [vmem:[%s178 + $0x298] sm:$0xff]
        %v296 = vld [vmem:[%s178 + $0x2a0] sm:$0xff]
        %v297 = vld [vmem:[%s178 + $0x2a8] sm:$0xff]
        %v298 = vld [vmem:[%s178 + $0x2b0] sm:$0xff]
        %v299 = vld [vmem:[%s178 + $0x2b8] sm:$0xff]
        %v300 = vld [vmem:[%s178 + $0x2c0] sm:$0xff]
        %v301 = vld [vmem:[%s178 + $0x2c8] sm:$0xff]
        %v302 = vld [vmem:[%s178 + $0x2d0] sm:$0xff]
        %v303 = vld [vmem:[%s178 + $0x2d8] sm:$0xff]
        %v304 = vld [vmem:[%s178 + $0x2e0] sm:$0xff]
        %v305 = vld [vmem:[%s178 + $0x2e8] sm:$0xff]
        %v306 = vld [vmem:[%s178 + $0x2f0] sm:$0xff]
        %v307 = vld [vmem:[%s178 + $0x2f8] sm:$0xff]
        %v308 = vld [vmem:[%s178 + $0x300] sm:$0xff]
        %v309 = vld [vmem:[%s178 + $0x308] sm:$0xff]
        %v310 = vld [vmem:[%s178 + $0x310] sm:$0xff]
        %v311 = vld [vmem:[%s178 + $0x318] sm:$0xff]
        %v312 = vld [vmem:[%s178 + $0x320] sm:$0xff]
        %v313 = vld [vmem:[%s178 + $0x328] sm:$0xff]
        %v314 = vld [vmem:[%s178 + $0x330] sm:$0xff]
        %v315 = vld [vmem:[%s178 + $0x338] sm:$0xff]
        %v316 = vld [vmem:[%s178 + $0x340] sm:$0xff]
        %v317 = vld [vmem:[%s178 + $0x348] sm:$0xff]
        %v318 = vld [vmem:[%s178 + $0x350] sm:$0xff]
        %v319 = vld [vmem:[%s178 + $0x358] sm:$0xff]
        %v320 = vld [vmem:[%s178 + $0x360] sm:$0xff]
        %v321 = vld [vmem:[%s178 + $0x368] sm:$0xff]
        %v322 = vld [vmem:[%s178 + $0x370] sm:$0xff]
        %v323 = vld [vmem:[%s178 + $0x378] sm:$0xff]
        %v324 = vld [vmem:[%s178 + $0x380] sm:$0xff]
        %v325 = vld [vmem:[%s178 + $0x388] sm:$0xff]
        %v326 = vld [vmem:[%s178 + $0x390] sm:$0xff]
        %v327 = vld [vmem:[%s178 + $0x398] sm:$0xff]
        %v328 = vld [vmem:[%s178 + $0x3a0] sm:$0xff]
        %v329 = vld [vmem:[%s178 + $0x3a8] sm:$0xff]
        %v330 = vld [vmem:[%s178 + $0x3b0] sm:$0xff]
        %v331 = vld [vmem:[%s178 + $0x3b8] sm:$0xff]
        %v332 = vld [vmem:[%s178 + $0x3c0] sm:$0xff]
        %v333 = vld [vmem:[%s178 + $0x3c8] sm:$0xff]
        %v334 = vld [vmem:[%s178 + $0x3d0] sm:$0xff]
        %v335 = vld [vmem:[%s178 + $0x3d8] sm:$0xff]
        %v336 = vld [vmem:[%s178 + $0x3e0] sm:$0xff]
        %v337 = vld [vmem:[%s178 + $0x3e8] sm:$0xff]
        %v338 = vld [vmem:[%s178 + $0x3f0] sm:$0xff]
        %v339 = vld [vmem:[%s178 + $0x3f8] sm:$0xff]
        %v340 = vpack.c.bf16 %v213, %v212
        %v341 = vpack.c.bf16 %v215, %v214
        %v342 = vpack.c.bf16 %v217, %v216
        %v343 = vpack.c.bf16 %v219, %v218
        %v344 = vpack.c.bf16 %v221, %v220
        %v345 = vpack.c.bf16 %v223, %v222
        %v346 = vpack.c.bf16 %v225, %v224
        %v347 = vpack.c.bf16 %v227, %v226
        %v348 = vpack.c.bf16 %v229, %v228
        %v349 = vpack.c.bf16 %v231, %v230
        %v350 = vpack.c.bf16 %v233, %v232
        %v351 = vpack.c.bf16 %v235, %v234
        %v352 = vpack.c.bf16 %v237, %v236
        %v353 = vpack.c.bf16 %v239, %v238
        %v354 = vpack.c.bf16 %v241, %v240
        %v355 = vpack.c.bf16 %v243, %v242
        %v356 = vpack.c.bf16 %v245, %v244
        %v357 = vpack.c.bf16 %v247, %v246
        %v358 = vpack.c.bf16 %v249, %v248
        %v359 = vpack.c.bf16 %v251, %v250
        %v360 = vpack.c.bf16 %v253, %v252
        %v361 = vpack.c.bf16 %v255, %v254
        %v362 = vpack.c.bf16 %v257, %v256
        %v363 = vpack.c.bf16 %v259, %v258
        %v364 = vpack.c.bf16 %v261, %v260
        %v365 = vpack.c.bf16 %v263, %v262
        %v366 = vpack.c.bf16 %v265, %v264
        %v367 = vpack.c.bf16 %v267, %v266
        %v368 = vpack.c.bf16 %v269, %v268
        %v369 = vpack.c.bf16 %v271, %v270
        %v370 = vpack.c.bf16 %v273, %v272
        %v371 = vpack.c.bf16 %v275, %v274
        %v372 = vpack.c.bf16 %v277, %v276
        %v373 = vpack.c.bf16 %v279, %v278
        %v374 = vpack.c.bf16 %v281, %v280
        %v375 = vpack.c.bf16 %v283, %v282
        %v376 = vpack.c.bf16 %v285, %v284
        %v377 = vpack.c.bf16 %v287, %v286
        %v378 = vpack.c.bf16 %v289, %v288
        %v379 = vpack.c.bf16 %v291, %v290
        %v380 = vpack.c.bf16 %v293, %v292
        %v381 = vpack.c.bf16 %v295, %v294
        %v382 = vpack.c.bf16 %v297, %v296
        %v383 = vpack.c.bf16 %v299, %v298
        %v384 = vpack.c.bf16 %v301, %v300
        %v385 = vpack.c.bf16 %v303, %v302
        %v386 = vpack.c.bf16 %v305, %v304
        %v387 = vpack.c.bf16 %v307, %v306
        %v388 = vpack.c.bf16 %v309, %v308
        %v389 = vpack.c.bf16 %v311, %v310
        %v390 = vpack.c.bf16 %v313, %v312
        %v391 = vpack.c.bf16 %v315, %v314
        %v392 = vpack.c.bf16 %v317, %v316
        %v393 = vpack.c.bf16 %v319, %v318
        %v394 = vpack.c.bf16 %v321, %v320
        %v395 = vpack.c.bf16 %v323, %v322
        %v396 = vpack.c.bf16 %v325, %v324
        %v397 = vpack.c.bf16 %v327, %v326
        %v398 = vpack.c.bf16 %v329, %v328
        %v399 = vpack.c.bf16 %v331, %v330
        %v400 = vpack.c.bf16 %v333, %v332
        %v401 = vpack.c.bf16 %v335, %v334
        %v402 = vpack.c.bf16 %v337, %v336
        %v403 = vpack.c.bf16 %v339, %v338
        %v412 = vunpack.c.l.b16 %v204
        %v413 = vunpack.c.l.b16 %v205
        %v414 = vunpack.c.l.b16 %v206
        %v415 = vunpack.c.l.b16 %v207
        %v416 = vunpack.c.l.b16 %v208
        %v417 = vunpack.c.l.b16 %v209
        %v418 = vunpack.c.l.b16 %v210
        %v419 = vunpack.c.l.b16 %v211
        %v420 = vpack.c.b16 %v413, %v412
        %v421 = vpack.c.b16 %v415, %v414
        %v422 = vpack.c.b16 %v417, %v416
        %v423 = vpack.c.b16 %v419, %v418
        %428 = vmatprep.subr.bf16.mxu0 0
        %429 = vmatpush1.bf16.xpose.msra.mxu0 %v340
        %430 = vmatprep.subr.bf16.mxu0 0
        %431 = vmatpush1.bf16.xpose.msra.mxu0 %v341
        %432 = vmatprep.subr.bf16.mxu0 0
        %433 = vmatpush1.bf16.xpose.msra.mxu0 %v342
        %434 = vmatprep.subr.bf16.mxu0 0
        %435 = vmatpush1.bf16.xpose.msra.mxu0 %v343
        %436 = vmatprep.subr.bf16.mxu0 0
        %437 = vmatpush1.bf16.xpose.msra.mxu0 %v344
        %438 = vmatprep.subr.bf16.mxu0 0
        %439 = vmatpush1.bf16.xpose.msra.mxu0 %v345
        %440 = vmatprep.subr.bf16.mxu0 0
        %441 = vmatpush1.bf16.xpose.msra.mxu0 %v346
        %442 = vmatprep.subr.bf16.mxu0 0
        %443 = vmatpush1.bf16.xpose.msra.mxu0 %v347
        %444 = vmatprep.subr.bf16.mxu0 0
        %445 = vmatpush1.bf16.xpose.msra.mxu0 %v348
        %446 = vmatprep.subr.bf16.mxu0 0
        %447 = vmatpush1.bf16.xpose.msra.mxu0 %v349
        %448 = vmatprep.subr.bf16.mxu0 0
        %449 = vmatpush1.bf16.xpose.msra.mxu0 %v350
        %450 = vmatprep.subr.bf16.mxu0 0
        %451 = vmatpush1.bf16.xpose.msra.mxu0 %v351
        %452 = vmatprep.subr.bf16.mxu0 0
        %453 = vmatpush1.bf16.xpose.msra.mxu0 %v352
        %454 = vmatprep.subr.bf16.mxu0 0
        %455 = vmatpush1.bf16.xpose.msra.mxu0 %v353
        %456 = vmatprep.subr.bf16.mxu0 0
        %457 = vmatpush1.bf16.xpose.msra.mxu0 %v354
        %458 = vmatprep.subr.bf16.mxu0 0
        %459 = vmatpush1.bf16.xpose.msra.mxu0 %v355
        %460 = vmatprep.mubr.bf16.mxu0 0
        %461 = vmatmul.mubr.bf16.gmra.mrb[0].mxu0 %v420
        %v462 = vpop.f32.mrb[0].mxu0
        %v463 = vadd.f32 0.0, %v462
        %v464 = vpop.f32.mrb[0].mxu0
        %v465 = vadd.f32 0.0, %v464
        %v466 = vpop.f32.mrb[0].mxu0
        %v467 = vadd.f32 0.0, %v466
        %v468 = vpop.f32.mrb[0].mxu0
        %v469 = vadd.f32 0.0, %v468
        %470 = vmatprep.mubr.bf16.mxu0 0
        %471 = vmatmul.mubr.bf16.gmra.mrb[0].mxu0 %v421
        %v472 = vpop.f32.mrb[0].mxu0
        %v473 = vadd.f32 0.0, %v472
        %v474 = vpop.f32.mrb[0].mxu0
        %v475 = vadd.f32 0.0, %v474
        %v476 = vpop.f32.mrb[0].mxu0
        %v477 = vadd.f32 0.0, %v476
        %v478 = vpop.f32.mrb[0].mxu0
        %v479 = vadd.f32 0.0, %v478
        %480 = vmatprep.mubr.bf16.mxu0 0
        %481 = vmatmul.mubr.bf16.gmra.mrb[0].mxu0 %v422
        %v482 = vpop.f32.mrb[0].mxu0
        %v483 = vadd.f32 0.0, %v482
        %v484 = vpop.f32.mrb[0].mxu0
        %v485 = vadd.f32 0.0, %v484
        %v486 = vpop.f32.mrb[0].mxu0
        %v487 = vadd.f32 0.0, %v486
        %v488 = vpop.f32.mrb[0].mxu0
        %v489 = vadd.f32 0.0, %v488
        %490 = vmatprep.mubr.bf16.mxu0 0
        %491 = vmatmul.mubr.bf16.gmra.mrb[0].mxu0 %v423
        %v492 = vpop.f32.mrb[0].mxu0
        %v493 = vadd.f32 0.0, %v492
        %v494 = vpop.f32.mrb[0].mxu0
        %v495 = vadd.f32 0.0, %v494
        %v496 = vpop.f32.mrb[0].mxu0
        %v497 = vadd.f32 0.0, %v496
        %v498 = vpop.f32.mrb[0].mxu0
        %v499 = vadd.f32 0.0, %v498
        %500 = vdwg.mxu0
        %501 = vmatprep.subr.bf16.mxu0 0
        %502 = vmatpush1.bf16.xpose.msra.mxu0 %v356
        %503 = vmatprep.subr.bf16.mxu0 0
        %504 = vmatpush1.bf16.xpose.msra.mxu0 %v357
        %505 = vmatprep.subr.bf16.mxu0 0
        %506 = vmatpush1.bf16.xpose.msra.mxu0 %v358
        %507 = vmatprep.subr.bf16.mxu0 0
        %508 = vmatpush1.bf16.xpose.msra.mxu0 %v359
        %509 = vmatprep.subr.bf16.mxu0 0
        %510 = vmatpush1.bf16.xpose.msra.mxu0 %v360
        %511 = vmatprep.subr.bf16.mxu0 0
        %512 = vmatpush1.bf16.xpose.msra.mxu0 %v361
        %513 = vmatprep.subr.bf16.mxu0 0
        %514 = vmatpush1.bf16.xpose.msra.mxu0 %v362
        %515 = vmatprep.subr.bf16.mxu0 0
        %516 = vmatpush1.bf16.xpose.msra.mxu0 %v363
        %517 = vmatprep.subr.bf16.mxu0 0
        %518 = vmatpush1.bf16.xpose.msra.mxu0 %v364
        %519 = vmatprep.subr.bf16.mxu0 0
        %520 = vmatpush1.bf16.xpose.msra.mxu0 %v365
        %521 = vmatprep.subr.bf16.mxu0 0
        %522 = vmatpush1.bf16.xpose.msra.mxu0 %v366
        %523 = vmatprep.subr.bf16.mxu0 0
        %524 = vmatpush1.bf16.xpose.msra.mxu0 %v367
        %525 = vmatprep.subr.bf16.mxu0 0
        %526 = vmatpush1.bf16.xpose.msra.mxu0 %v368
        %527 = vmatprep.subr.bf16.mxu0 0
        %528 = vmatpush1.bf16.xpose.msra.mxu0 %v369
        %529 = vmatprep.subr.bf16.mxu0 0
        %530 = vmatpush1.bf16.xpose.msra.mxu0 %v370
        %531 = vmatprep.subr.bf16.mxu0 0
        %532 = vmatpush1.bf16.xpose.msra.mxu0 %v371
        %533 = vmatprep.mubr.bf16.mxu0 0
        %534 = vmatmul.mubr.bf16.gmra.mrb[0].mxu0 %v420
        %v535 = vpop.f32.mrb[0].mxu0
        %v536 = vadd.f32 0.0, %v535
        %v537 = vpop.f32.mrb[0].mxu0
        %v538 = vadd.f32 0.0, %v537
        %v539 = vpop.f32.mrb[0].mxu0
        %v540 = vadd.f32 0.0, %v539
        %v541 = vpop.f32.mrb[0].mxu0
        %v542 = vadd.f32 0.0, %v541
        %543 = vmatprep.mubr.bf16.mxu0 0
        %544 = vmatmul.mubr.bf16.gmra.mrb[0].mxu0 %v421
        %v545 = vpop.f32.mrb[0].mxu0
        %v546 = vadd.f32 0.0, %v545
        %v547 = vpop.f32.mrb[0].mxu0
        %v548 = vadd.f32 0.0, %v547
        %v549 = vpop.f32.mrb[0].mxu0
        %v550 = vadd.f32 0.0, %v549
        %v551 = vpop.f32.mrb[0].mxu0
        %v552 = vadd.f32 0.0, %v551
        %553 = vmatprep.mubr.bf16.mxu0 0
        %554 = vmatmul.mubr.bf16.gmra.mrb[0].mxu0 %v422
        %v555 = vpop.f32.mrb[0].mxu0
        %v556 = vadd.f32 0.0, %v555
        %v557 = vpop.f32.mrb[0].mxu0
        %v558 = vadd.f32 0.0, %v557
        %v559 = vpop.f32.mrb[0].mxu0
        %v560 = vadd.f32 0.0, %v559
        %v561 = vpop.f32.mrb[0].mxu0
        %v562 = vadd.f32 0.0, %v561
        %563 = vmatprep.mubr.bf16.mxu0 0
        %564 = vmatmul.mubr.bf16.gmra.mrb[0].mxu0 %v423
        %v565 = vpop.f32.mrb[0].mxu0
        %v566 = vadd.f32 0.0, %v565
        %v567 = vpop.f32.mrb[0].mxu0
        %v568 = vadd.f32 0.0, %v567
        %v569 = vpop.f32.mrb[0].mxu0
        %v570 = vadd.f32 0.0, %v569
        %v571 = vpop.f32.mrb[0].mxu0
        %v572 = vadd.f32 0.0, %v571
        %573 = vdwg.mxu0
        %574 = vmatprep.subr.bf16.mxu0 0
        %575 = vmatpush1.bf16.xpose.msra.mxu0 %v372
        %576 = vmatprep.subr.bf16.mxu0 0
        %577 = vmatpush1.bf16.xpose.msra.mxu0 %v373
        %578 = vmatprep.subr.bf16.mxu0 0
        %579 = vmatpush1.bf16.xpose.msra.mxu0 %v374
        %580 = vmatprep.subr.bf16.mxu0 0
        %581 = vmatpush1.bf16.xpose.msra.mxu0 %v375
        %582 = vmatprep.subr.bf16.mxu0 0
        %583 = vmatpush1.bf16.xpose.msra.mxu0 %v376
        %584 = vmatprep.subr.bf16.mxu0 0
        %585 = vmatpush1.bf16.xpose.msra.mxu0 %v377
        %586 = vmatprep.subr.bf16.mxu0 0
        %587 = vmatpush1.bf16.xpose.msra.mxu0 %v378
        %588 = vmatprep.subr.bf16.mxu0 0
        %589 = vmatpush1.bf16.xpose.msra.mxu0 %v379
        %590 = vmatprep.subr.bf16.mxu0 0
        %591 = vmatpush1.bf16.xpose.msra.mxu0 %v380
        %592 = vmatprep.subr.bf16.mxu0 0
        %593 = vmatpush1.bf16.xpose.msra.mxu0 %v381
        %594 = vmatprep.subr.bf16.mxu0 0
        %595 = vmatpush1.bf16.xpose.msra.mxu0 %v382
        %596 = vmatprep.subr.bf16.mxu0 0
        %597 = vmatpush1.bf16.xpose.msra.mxu0 %v383
        %598 = vmatprep.subr.bf16.mxu0 0
        %599 = vmatpush1.bf16.xpose.msra.mxu0 %v384
        %600 = vmatprep.subr.bf16.mxu0 0
        %601 = vmatpush1.bf16.xpose.msra.mxu0 %v385
        %602 = vmatprep.subr.bf16.mxu0 0
        %603 = vmatpush1.bf16.xpose.msra.mxu0 %v386
        %604 = vmatprep.subr.bf16.mxu0 0
        %605 = vmatpush1.bf16.xpose.msra.mxu0 %v387
        %606 = vmatprep.mubr.bf16.mxu0 0
        %607 = vmatmul.mubr.bf16.gmra.mrb[0].mxu0 %v420
        %v608 = vpop.f32.mrb[0].mxu0
        %v609 = vadd.f32 0.0, %v608
        %v610 = vpop.f32.mrb[0].mxu0
        %v611 = vadd.f32 0.0, %v610
        %v612 = vpop.f32.mrb[0].mxu0
        %v613 = vadd.f32 0.0, %v612
        %v614 = vpop.f32.mrb[0].mxu0
        %v615 = vadd.f32 0.0, %v614
        %616 = vmatprep.mubr.bf16.mxu0 0
        %617 = vmatmul.mubr.bf16.gmra.mrb[0].mxu0 %v421
        %v618 = vpop.f32.mrb[0].mxu0
        %v619 = vadd.f32 0.0, %v618
        %v620 = vpop.f32.mrb[0].mxu0
        %v621 = vadd.f32 0.0, %v620
        %v622 = vpop.f32.mrb[0].mxu0
        %v623 = vadd.f32 0.0, %v622
        %v624 = vpop.f32.mrb[0].mxu0
        %v625 = vadd.f32 0.0, %v624
        %626 = vmatprep.mubr.bf16.mxu0 0
        %627 = vmatmul.mubr.bf16.gmra.mrb[0].mxu0 %v422
        %v628 = vpop.f32.mrb[0].mxu0
        %v629 = vadd.f32 0.0, %v628
        %v630 = vpop.f32.mrb[0].mxu0
        %v631 = vadd.f32 0.0, %v630
        %v632 = vpop.f32.mrb[0].mxu0
        %v633 = vadd.f32 0.0, %v632
        %v634 = vpop.f32.mrb[0].mxu0
        %v635 = vadd.f32 0.0, %v634
        %636 = vmatprep.mubr.bf16.mxu0 0
        %637 = vmatmul.mubr.bf16.gmra.mrb[0].mxu0 %v423
        %v638 = vpop.f32.mrb[0].mxu0
        %v639 = vadd.f32 0.0, %v638
        %v640 = vpop.f32.mrb[0].mxu0
        %v641 = vadd.f32 0.0, %v640
        %v642 = vpop.f32.mrb[0].mxu0
        %v643 = vadd.f32 0.0, %v642
        %v644 = vpop.f32.mrb[0].mxu0
        %v645 = vadd.f32 0.0, %v644
        %646 = vdwg.mxu0
        %647 = vmatprep.subr.bf16.mxu0 0
        %648 = vmatpush1.bf16.xpose.msra.mxu0 %v388
        %649 = vmatprep.subr.bf16.mxu0 0
        %650 = vmatpush1.bf16.xpose.msra.mxu0 %v389
        %651 = vmatprep.subr.bf16.mxu0 0
        %652 = vmatpush1.bf16.xpose.msra.mxu0 %v390
        %653 = vmatprep.subr.bf16.mxu0 0
        %654 = vmatpush1.bf16.xpose.msra.mxu0 %v391
        %655 = vmatprep.subr.bf16.mxu0 0
        %656 = vmatpush1.bf16.xpose.msra.mxu0 %v392
        %657 = vmatprep.subr.bf16.mxu0 0
        %658 = vmatpush1.bf16.xpose.msra.mxu0 %v393
        %659 = vmatprep.subr.bf16.mxu0 0
        %660 = vmatpush1.bf16.xpose.msra.mxu0 %v394
        %661 = vmatprep.subr.bf16.mxu0 0
        %662 = vmatpush1.bf16.xpose.msra.mxu0 %v395
        %663 = vmatprep.subr.bf16.mxu0 0
        %664 = vmatpush1.bf16.xpose.msra.mxu0 %v396
        %665 = vmatprep.subr.bf16.mxu0 0
        %666 = vmatpush1.bf16.xpose.msra.mxu0 %v397
        %667 = vmatprep.subr.bf16.mxu0 0
        %668 = vmatpush1.bf16.xpose.msra.mxu0 %v398
        %669 = vmatprep.subr.bf16.mxu0 0
        %670 = vmatpush1.bf16.xpose.msra.mxu0 %v399
        %671 = vmatprep.subr.bf16.mxu0 0
        %672 = vmatpush1.bf16.xpose.msra.mxu0 %v400
        %673 = vmatprep.subr.bf16.mxu0 0
        %674 = vmatpush1.bf16.xpose.msra.mxu0 %v401
        %675 = vmatprep.subr.bf16.mxu0 0
        %676 = vmatpush1.bf16.xpose.msra.mxu0 %v402
        %677 = vmatprep.subr.bf16.mxu0 0
        %678 = vmatpush1.bf16.xpose.msra.mxu0 %v403
        %679 = vmatprep.mubr.bf16.mxu0 0
        %680 = vmatmul.mubr.bf16.gmra.mrb[0].mxu0 %v420
        %v681 = vpop.f32.mrb[0].mxu0
        %v682 = vadd.f32 0.0, %v681
        %v683 = vpop.f32.mrb[0].mxu0
        %v684 = vadd.f32 0.0, %v683
        %v685 = vpop.f32.mrb[0].mxu0
        %v686 = vadd.f32 0.0, %v685
        %v687 = vpop.f32.mrb[0].mxu0
        %v688 = vadd.f32 0.0, %v687
        %689 = vmatprep.mubr.bf16.mxu0 0
        %690 = vmatmul.mubr.bf16.gmra.mrb[0].mxu0 %v421
        %v691 = vpop.f32.mrb[0].mxu0
        %v692 = vadd.f32 0.0, %v691
        %v693 = vpop.f32.mrb[0].mxu0
        %v694 = vadd.f32 0.0, %v693
        %v695 = vpop.f32.mrb[0].mxu0
        %v696 = vadd.f32 0.0, %v695
        %v697 = vpop.f32.mrb[0].mxu0
        %v698 = vadd.f32 0.0, %v697
        %699 = vmatprep.mubr.bf16.mxu0 0
        %700 = vmatmul.mubr.bf16.gmra.mrb[0].mxu0 %v422
        %v701 = vpop.f32.mrb[0].mxu0
        %v702 = vadd.f32 0.0, %v701
        %v703 = vpop.f32.mrb[0].mxu0
        %v704 = vadd.f32 0.0, %v703
        %v705 = vpop.f32.mrb[0].mxu0
        %v706 = vadd.f32 0.0, %v705
        %v707 = vpop.f32.mrb[0].mxu0
        %v708 = vadd.f32 0.0, %v707
        %709 = vmatprep.mubr.bf16.mxu0 0
        %710 = vmatmul.mubr.bf16.gmra.mrb[0].mxu0 %v423
        %v711 = vpop.f32.mrb[0].mxu0
        %v712 = vadd.f32 0.0, %v711
        %v713 = vpop.f32.mrb[0].mxu0
        %v714 = vadd.f32 0.0, %v713
        %v715 = vpop.f32.mrb[0].mxu0
        %v716 = vadd.f32 0.0, %v715
        %v717 = vpop.f32.mrb[0].mxu0
        %v718 = vadd.f32 0.0, %v717
        %719 = vdwg.mxu0
        %v720 = vpack.c.bf16 %v467, %v463
        %v721 = vpack.c.bf16 %v469, %v465
        %v722 = vpack.c.bf16 %v540, %v536
        %v723 = vpack.c.bf16 %v542, %v538
        %v724 = vpack.c.bf16 %v613, %v609
        %v725 = vpack.c.bf16 %v615, %v611
        %v726 = vpack.c.bf16 %v686, %v682
        %v727 = vpack.c.bf16 %v688, %v684
        %v728 = vpack.c.bf16 %v477, %v473
        %v729 = vpack.c.bf16 %v479, %v475
        %v730 = vpack.c.bf16 %v550, %v546
        %v731 = vpack.c.bf16 %v552, %v548
        %v732 = vpack.c.bf16 %v623, %v619
        %v733 = vpack.c.bf16 %v625, %v621
        %v734 = vpack.c.bf16 %v696, %v692
        %v735 = vpack.c.bf16 %v698, %v694
        %v736 = vpack.c.bf16 %v487, %v483
        %v737 = vpack.c.bf16 %v489, %v485
        %v738 = vpack.c.bf16 %v560, %v556
        %v739 = vpack.c.bf16 %v562, %v558
        %v740 = vpack.c.bf16 %v633, %v629
        %v741 = vpack.c.bf16 %v635, %v631
        %v742 = vpack.c.bf16 %v706, %v702
        %v743 = vpack.c.bf16 %v708, %v704
        %v744 = vpack.c.bf16 %v497, %v493
        %v745 = vpack.c.bf16 %v499, %v495
        %v746 = vpack.c.bf16 %v570, %v566
        %v747 = vpack.c.bf16 %v572, %v568
        %v748 = vpack.c.bf16 %v643, %v639
        %v749 = vpack.c.bf16 %v645, %v641
        %v750 = vpack.c.bf16 %v716, %v712
        %v751 = vpack.c.bf16 %v718, %v714
        %v784 = vunpack.c.l.b16 %v720
        %v785 = vunpack.c.l.b16 %v721
        %v786 = vunpack.c.l.b16 %v722
        %v787 = vunpack.c.l.b16 %v723
        %v788 = vunpack.c.l.b16 %v724
        %v789 = vunpack.c.l.b16 %v725
        %v790 = vunpack.c.l.b16 %v726
        %v791 = vunpack.c.l.b16 %v727
        %v792 = vunpack.c.h.b16 %v720
        %v793 = vunpack.c.h.b16 %v721
        %v794 = vunpack.c.h.b16 %v722
        %v795 = vunpack.c.h.b16 %v723
        %v796 = vunpack.c.h.b16 %v724
        %v797 = vunpack.c.h.b16 %v725
        %v798 = vunpack.c.h.b16 %v726
        %v799 = vunpack.c.h.b16 %v727
        %v800 = vunpack.c.l.b16 %v728
        %v801 = vunpack.c.l.b16 %v729
        %v802 = vunpack.c.l.b16 %v730
        %v803 = vunpack.c.l.b16 %v731
        %v804 = vunpack.c.l.b16 %v732
        %v805 = vunpack.c.l.b16 %v733
        %v806 = vunpack.c.l.b16 %v734
        %v807 = vunpack.c.l.b16 %v735
        %v808 = vunpack.c.h.b16 %v728
        %v809 = vunpack.c.h.b16 %v729
        %v810 = vunpack.c.h.b16 %v730
        %v811 = vunpack.c.h.b16 %v731
        %v812 = vunpack.c.h.b16 %v732
        %v813 = vunpack.c.h.b16 %v733
        %v814 = vunpack.c.h.b16 %v734
        %v815 = vunpack.c.h.b16 %v735
        %v816 = vunpack.c.l.b16 %v736
        %v817 = vunpack.c.l.b16 %v737
        %v818 = vunpack.c.l.b16 %v738
        %v819 = vunpack.c.l.b16 %v739
        %v820 = vunpack.c.l.b16 %v740
        %v821 = vunpack.c.l.b16 %v741
        %v822 = vunpack.c.l.b16 %v742
        %v823 = vunpack.c.l.b16 %v743
        %v824 = vunpack.c.h.b16 %v736
        %v825 = vunpack.c.h.b16 %v737
        %v826 = vunpack.c.h.b16 %v738
        %v827 = vunpack.c.h.b16 %v739
        %v828 = vunpack.c.h.b16 %v740
        %v829 = vunpack.c.h.b16 %v741
        %v830 = vunpack.c.h.b16 %v742
        %v831 = vunpack.c.h.b16 %v743
        %v832 = vunpack.c.l.b16 %v744
        %v833 = vunpack.c.l.b16 %v745
        %v834 = vunpack.c.l.b16 %v746
        %v835 = vunpack.c.l.b16 %v747
        %v836 = vunpack.c.l.b16 %v748
        %v837 = vunpack.c.l.b16 %v749
        %v838 = vunpack.c.l.b16 %v750
        %v839 = vunpack.c.l.b16 %v751
        %v840 = vunpack.c.h.b16 %v744
        %v841 = vunpack.c.h.b16 %v745
        %v842 = vunpack.c.h.b16 %v746
        %v843 = vunpack.c.h.b16 %v747
        %v844 = vunpack.c.h.b16 %v748
        %v845 = vunpack.c.h.b16 %v749
        %v846 = vunpack.c.h.b16 %v750
        %v847 = vunpack.c.h.b16 %v751
        %v848 = vpack.c.b16 %v785, %v784
        %v849 = vpack.c.b16 %v787, %v786
        %v850 = vpack.c.b16 %v789, %v788
        %v851 = vpack.c.b16 %v791, %v790
        %v852 = vpack.c.b16 %v793, %v792
        %v853 = vpack.c.b16 %v795, %v794
        %v854 = vpack.c.b16 %v797, %v796
        %v855 = vpack.c.b16 %v799, %v798
        %v856 = vpack.c.b16 %v801, %v800
        %v857 = vpack.c.b16 %v803, %v802
        %v858 = vpack.c.b16 %v805, %v804
        %v859 = vpack.c.b16 %v807, %v806
        %v860 = vpack.c.b16 %v809, %v808
        %v861 = vpack.c.b16 %v811, %v810
        %v862 = vpack.c.b16 %v813, %v812
        %v863 = vpack.c.b16 %v815, %v814
        %v864 = vpack.c.b16 %v817, %v816
        %v865 = vpack.c.b16 %v819, %v818
        %v866 = vpack.c.b16 %v821, %v820
        %v867 = vpack.c.b16 %v823, %v822
        %v868 = vpack.c.b16 %v825, %v824
        %v869 = vpack.c.b16 %v827, %v826
        %v870 = vpack.c.b16 %v829, %v828
        %v871 = vpack.c.b16 %v831, %v830
        %v872 = vpack.c.b16 %v833, %v832
        %v873 = vpack.c.b16 %v835, %v834
        %v874 = vpack.c.b16 %v837, %v836
        %v875 = vpack.c.b16 %v839, %v838
        %v876 = vpack.c.b16 %v841, %v840
        %v877 = vpack.c.b16 %v843, %v842
        %v878 = vpack.c.b16 %v845, %v844
        %v879 = vpack.c.b16 %v847, %v846
        %912 = vst [vmem:[%s198] sm:$0xff] %v848
        %913 = vst [vmem:[%s198 + $0x8] sm:$0xff] %v849
        %914 = vst [vmem:[%s198 + $0x10] sm:$0xff] %v850
        %915 = vst [vmem:[%s198 + $0x18] sm:$0xff] %v851
        %916 = vst [vmem:[%s198 + $0x20] sm:$0xff] %v852
        %917 = vst [vmem:[%s198 + $0x28] sm:$0xff] %v853
        %918 = vst [vmem:[%s198 + $0x30] sm:$0xff] %v854
        %919 = vst [vmem:[%s198 + $0x38] sm:$0xff] %v855
        %920 = vst [vmem:[%s198 + $0x40] sm:$0xff] %v856
        %921 = vst [vmem:[%s198 + $0x48] sm:$0xff] %v857
        %922 = vst [vmem:[%s198 + $0x50] sm:$0xff] %v858
        %923 = vst [vmem:[%s198 + $0x58] sm:$0xff] %v859
        %924 = vst [vmem:[%s198 + $0x60] sm:$0xff] %v860
        %925 = vst [vmem:[%s198 + $0x68] sm:$0xff] %v861
        %926 = vst [vmem:[%s198 + $0x70] sm:$0xff] %v862
        %927 = vst [vmem:[%s198 + $0x78] sm:$0xff] %v863
        %928 = vst [vmem:[%s198 + $0x80] sm:$0xff] %v864
        %929 = vst [vmem:[%s198 + $0x88] sm:$0xff] %v865
        %930 = vst [vmem:[%s198 + $0x90] sm:$0xff] %v866
        %931 = vst [vmem:[%s198 + $0x98] sm:$0xff] %v867
        %932 = vst [vmem:[%s198 + $0xa0] sm:$0xff] %v868
        %933 = vst [vmem:[%s198 + $0xa8] sm:$0xff] %v869
        %934 = vst [vmem:[%s198 + $0xb0] sm:$0xff] %v870
        %935 = vst [vmem:[%s198 + $0xb8] sm:$0xff] %v871
        %936 = vst [vmem:[%s198 + $0xc0] sm:$0xff] %v872
        %937 = vst [vmem:[%s198 + $0xc8] sm:$0xff] %v873
        %938 = vst [vmem:[%s198 + $0xd0] sm:$0xff] %v874
        %939 = vst [vmem:[%s198 + $0xd8] sm:$0xff] %v875
        %940 = vst [vmem:[%s198 + $0xe0] sm:$0xff] %v876
        %941 = vst [vmem:[%s198 + $0xe8] sm:$0xff] %v877
        %942 = vst [vmem:[%s198 + $0xf0] sm:$0xff] %v878
        %943 = vst [vmem:[%s198 + $0xf8] sm:$0xff] %v879
        %s944 = sand.u32 %s94, 1
        %s945 = scalar_lea.sflag [#allocation4], %s944
        %s946 = sand.u32 %s94, 1
        %s947 = smul.addr %s946, 256
        %s948 = scalar_lea.vmem [#allocation7], %s947
        // Predicated region
        $region37: #{tpu_custom_call.1} parent=27 // pred_check
          %p949 = pneg %p104
        $region38: #{tpu_custom_call.1} parent=27 // pred_check_branch
          %951 = sbr.rel (%p949) target = $region40
        $region39: #{tpu_custom_call.1} parent=27 // pred_region
          %s952 = smul.u32 8, %s24
          %s953 = smul.u32 8, %s25
          %s955 = ssub.s32 4096, 4096
          %956 = vsyncadd %s945, %s955
          %s957 = smul.addr %s952, 16
          %s958 = sadd.s32 %s953, %s957
          %s959 = smul.addr %s958, 64
          %s960 = scalar_lea.hbm %s2, %s959
          %s961 = sshll.u32 %s948, 4
          %s962 = int_to_ptr.vmem [resolvable:$true] %s961
          %967 = dma.vmem_to_hbm [thread:$0]  %s962, 4096, %s960, %s945, 512, 1024, 32
        $region40: #{tpu_custom_call.1} parent=27 // pred_fallthru
          _
      $region28: #{tpu_custom_call.1} parent=5 // pred_fallthru
        _
      %p968 = scmp.le.s32.totalorder 2, %s15
      // Predicated region
      $region41: #{tpu_custom_call.1} parent=5 // pred_check
        %p969 = pneg %p968
      $region42: #{tpu_custom_call.1} parent=5 // pred_check_branch
        %971 = sbr.rel (%p969) target = $region44
      $region43: #{tpu_custom_call.1} parent=5 // pred_region
        %s972 = ssub.s32 %s15, 2
        // Predicated region
        $region45: #{tpu_custom_call.1} parent=43 // pred_check
          %p973 = pneg %p110
        $region46: #{tpu_custom_call.1} parent=43 // pred_check_branch
          %975 = sbr.rel (%p973) target = $region48
        $region47: #{tpu_custom_call.1} parent=43 // pred_region
          %s976 = sand.u32 %s95, 1
          %s977 = scalar_lea.sflag [#allocation4], %s976
          %s978 = sand.u32 %s95, 1
          %s979 = smul.addr %s978, 256
          %s980 = scalar_lea.vmem [#allocation7], %s979
          %981 = dma.done %s977, 4096
        $region48: #{tpu_custom_call.1} parent=43 // pred_fallthru
          _
      $region44: #{tpu_custom_call.1} parent=5 // pred_fallthru
        _
    $region6: #{tpu_custom_call.1} parent=1 // loop_footer
      %s19 = sadd.s32 1, %s15
    $region7: #{tpu_custom_call.1} parent=1 // loop_footer_branch
      %14 = sbr.rel target = $region3
    $region8: #{tpu_custom_call.1} parent=1 // loop_exit
      _
    %982 = vsyncpa [#allocation3], 1
    %s983 = scalar_lea.sflag [#allocation3], 1
    %984 = vsyncpa %s983, 1
    %985 = vsyncpa [#allocation6], 1
    %s986 = scalar_lea.sflag [#allocation6], 1
    %987 = vsyncpa %s986, 1
    %988 = vsyncpa [#allocation4], 1
    %s989 = scalar_lea.sflag [#allocation4], 1
    %990 = vsyncpa %s989, 1

</llo_original>
